<compile_context>
chip_gen: v7x
topology: tpu7x:2x2x1
jax: 0.10.0
libtpu: 0.0.40
codegen_flags: <defaults>
</compile_context>

<pallas_src>
import jax
import jax.numpy as jnp
from jax import lax
from jax.experimental import pallas as pl
from jax.experimental.pallas import tpu as pltpu


def _round_up(x, m):
    return (x + m - 1) // m * m


def edge_classifier_kernel(hd_ref, hs_ref, side_ref,
                           w1_hd_ref, w1_hs_ref, w1_side_ref,
                           b1_ref, w2_ref, b2_ref, out_ref):
    # Layer 1: split-K matmuls (h_dst, h_src, packed side columns), f32 acc.
    z = jnp.dot(hd_ref[...], w1_hd_ref[...], preferred_element_type=jnp.float32)
    z = z + jnp.dot(hs_ref[...], w1_hs_ref[...], preferred_element_type=jnp.float32)
    z = z + jnp.dot(side_ref[...], w1_side_ref[...], preferred_element_type=jnp.float32)
    z = jnp.maximum(z + b1_ref[...], 0.0)                       # (tn, nodemb) f32

    # Layer 2: output width is 1 -> contract the nodemb axis against w2 to get a
    # lane-dense (1, tn) row of logits (unmasked stores, tiny output buffers).
    logits = lax.dot_general(w2_ref[...], z, (((1,), (1,)), ((), ())),
                             preferred_element_type=jnp.float32) + b2_ref[...]

    # Sigmoid (EUP exp), f32 output.
    out_ref[0] = 1.0 / (1.0 + jnp.exp(-logits))


def edge_classifier(f_dst, h_dst, f_src, h_src, distance, params, *, row_tile=4096):
    """Pallas wrapper.

    params = (w1, b1, w2, b2) with
      w1: (2*nodemb + 2*nodefeat + 1, nodemb)  [row order f_dst|h_dst|f_src|h_src|dist]
      b1: (1, nodemb), w2: (nodemb, 1), b2: (1, 1)
    Per-edge inputs are consumed in whatever dtype they arrive in (pass bf16 from
    the upstream gather for ~2x less HBM traffic).  Returns (E, 1) float32.
    """
    w1, b1, w2, b2 = params
    E = h_dst.shape[0]
    ne = h_dst.shape[1]
    nf = f_dst.shape[1]
    in_dim = w1.shape[0]
    assert in_dim == 2 * ne + 2 * nf + 1

    dt = h_dst.dtype
    itemsize = jnp.dtype(dt).itemsize

    # Tiny packed side slab [f_dst | f_src | dist | zeros], padded to >= 8 cols
    # so the K=side matmul is sublane-aligned.  Only ~(2*nf+1)*itemsize B/edge.
    side_dim = 2 * nf + 1
    side_pad = _round_up(max(side_dim, 8), 8)
    side = jnp.concatenate(
        [f_dst.astype(dt), f_src.astype(dt), distance.reshape(E, 1).astype(dt),
         jnp.zeros((E, side_pad - side_dim), dt)], axis=1)

    # Split W1 by concat segment (row order f_dst | h_dst | f_src | h_src | dist).
    w1_fd = w1[0:nf]
    w1_hd = w1[nf:nf + ne]
    w1_fs = w1[nf + ne:2 * nf + ne]
    w1_hs = w1[2 * nf + ne:2 * nf + 2 * ne]
    w1_d = w1[2 * nf + 2 * ne:]
    w1_side = jnp.concatenate(
        [w1_fd, w1_fs, w1_d, jnp.zeros((side_pad - side_dim, ne), w1.dtype)], axis=0)

    w1_hd_c = w1_hd.astype(dt)
    w1_hs_c = w1_hs.astype(dt)
    w1_side_c = w1_side.astype(dt)
    b1_c = b1.reshape(1, ne).astype(jnp.float32)
    w2_row = w2.reshape(1, ne).astype(jnp.float32)
    b2_c = b2.reshape(1, 1).astype(jnp.float32)

    # Row tile: big (amortize per-step overhead) but at least 2 grid steps so the
    # parallel axis can split across v7x's two TensorCores; multiple of 16 so
    # bf16 (16,128) sublane tiling stays unpadded.
    tn = max(16, min(row_tile, _round_up(pl.cdiv(E, 2), 16)))
    grid_n = pl.cdiv(E, tn)

    cost = pl.CostEstimate(
        flops=2 * E * (in_dim * ne + ne),
        transcendentals=E,
        bytes_accessed=(E * (2 * ne + side_pad) * itemsize          # per-edge inputs
                        + (2 * ne * ne + side_pad * ne) * itemsize  # W1 blocks
                        + (ne + ne + 1) * 4                         # b1, w2, b2
                        + grid_n * tn * 4),                         # output
    )

    out = pl.pallas_call(
        edge_classifier_kernel,
        out_shape=jax.ShapeDtypeStruct((grid_n, 1, tn), jnp.float32),
        grid=(grid_n,),
        in_specs=[
            pl.BlockSpec((tn, ne), lambda i: (i, 0)),          # h_dst rows, tiled
            pl.BlockSpec((tn, ne), lambda i: (i, 0)),          # h_src rows, tiled
            pl.BlockSpec((tn, side_pad), lambda i: (i, 0)),    # packed side rows
            pl.BlockSpec((ne, ne), lambda i: (0, 0)),          # W1 blocks: resident
            pl.BlockSpec((ne, ne), lambda i: (0, 0)),
            pl.BlockSpec((side_pad, ne), lambda i: (0, 0)),
            pl.BlockSpec((1, ne), lambda i: (0, 0)),           # b1
            pl.BlockSpec((1, ne), lambda i: (0, 0)),           # w2 (as a row)
            pl.BlockSpec((1, 1), lambda i: (0, 0)),            # b2
        ],
        out_specs=pl.BlockSpec((1, 1, tn), lambda i: (i, 0, 0)),  # lane-dense rows
        compiler_params=pltpu.CompilerParams(
            dimension_semantics=("parallel",),
            vmem_limit_bytes=32 * 1024 * 1024),
        cost_estimate=cost,
    )(h_dst, h_src.astype(dt), side, w1_hd_c, w1_hs_c, w1_side_c, b1_c, w2_row, b2_c)

    # (grid, 1, tn) -> (grid*tn, 1); rows >= E came from the partial last input
    # block (garbage-in/garbage-out on padded rows only) and are sliced off.
    return out.reshape(grid_n * tn, 1)[:E]


def init_params(key, nodemb, nodefeat):
    """Deterministic synthetic parameters matching EdgeClassifier.__init__ shapes."""
    in_dim = 2 * nodemb + 2 * nodefeat + 1
    k1, k2, k3, k4 = jax.random.split(key, 4)
    w1 = jax.random.normal(k1, (in_dim, nodemb), jnp.float32) * 0.05
    b1 = jax.random.normal(k2, (1, nodemb), jnp.float32) * 0.05
    w2 = jax.random.normal(k3, (nodemb, 1), jnp.float32) * 0.05
    b2 = jax.random.normal(k4, (1, 1), jnp.float32) * 0.05
    return (w1, b1, w2, b2)


def reference(f_dst, h_dst, f_src, h_src, distance, params):
    w1, b1, w2, b2 = params
    cat = jnp.concatenate([f_dst, h_dst, f_src, h_src, distance[:, None]], axis=1)
    z = jnp.maximum(cat @ w1 + b1, 0.0)
    return jax.nn.sigmoid(z @ w2 + b2)


def _make_inputs(key, E, nodemb, nodefeat):
    kfd, khd, kfs, khs, kd = jax.random.split(key, 5)
    f_dst = jax.random.normal(kfd, (E, nodefeat), jnp.float32)
    h_dst = jax.random.normal(khd, (E, nodemb), jnp.float32)
    f_src = jax.random.normal(kfs, (E, nodefeat), jnp.float32)
    h_src = jax.random.normal(khs, (E, nodemb), jnp.float32)
    dist = jax.random.uniform(kd, (E,), jnp.float32)
    return f_dst, h_dst, f_src, h_src, dist


if __name__ == "__main__":
    nodemb, nodefeat = 32, 2

    key = jax.random.PRNGKey(0)
    kp, k_small, k_big = jax.random.split(key, 3)
    params = init_params(kp, nodemb, nodefeat)

    # --- small test (E=8), f32 inputs: near-exact vs reference ----------------
    ins_small = _make_inputs(k_small, 8, nodemb, nodefeat)
    out_small = jax.block_until_ready(edge_classifier(*ins_small, params))
    ref_small = reference(*ins_small, params)
    assert out_small.shape == (8, 1)
    assert jnp.allclose(out_small, ref_small, atol=2e-5, rtol=2e-5)

    # --- small test, bf16 inputs (simulates an upstream gather emitting bf16) -
    ins_bf16 = tuple(a.astype(jnp.bfloat16) for a in ins_small)
    out_bf16 = jax.block_until_ready(edge_classifier(*ins_bf16, params))
    assert jnp.allclose(out_bf16, ref_small, atol=2e-2, rtol=2e-2)

    # --- larger test: multi-step parallel grid + partial final block ----------
    E_big = 1000
    ins_big = _make_inputs(k_big, E_big, nodemb, nodefeat)
    ref_big = reference(*ins_big, params)

    out_big = jax.block_until_ready(edge_classifier(*ins_big, params, row_tile=256))
    assert out_big.shape == (E_big, 1)
    assert jnp.allclose(out_big, ref_big, atol=2e-5, rtol=2e-5)

    # Default row_tile: tn clamps to ceil(E/2) rounded to 16 -> 2-step grid.
    out_def = jax.block_until_ready(edge_classifier(*ins_big, params))
    assert jnp.allclose(out_def, ref_big, atol=2e-5, rtol=2e-5)

    print("KERNEL_OK")
</pallas_src>

<mosaic_0001>
module attributes {stable_mosaic.version = 11 : i64} {
  func.func @edge_classifier_kernel(%arg0: i32, %arg1: memref<16x32xf32, #tpu.memory_space<vmem>>, %arg2: memref<16x32xf32, #tpu.memory_space<vmem>>, %arg3: memref<16x8xf32, #tpu.memory_space<vmem>>, %arg4: memref<32x32xf32, #tpu.memory_space<vmem>>, %arg5: memref<32x32xf32, #tpu.memory_space<vmem>>, %arg6: memref<8x32xf32, #tpu.memory_space<vmem>>, %arg7: memref<1x32xf32, #tpu.memory_space<vmem>>, %arg8: memref<1x32xf32, #tpu.memory_space<vmem>>, %arg9: memref<1x1xf32, #tpu.memory_space<vmem>>, %arg10: memref<1x1x16xf32, #tpu.memory_space<vmem>>) attributes {dimension_semantics = [#tpu.dimension_semantics<parallel>], iteration_bounds = array<i64: 1>, scalar_prefetch = 0 : i64, scratch_operands = 0 : i64, tpu.core_type = #tpu.core_type<tc>, window_params = [{transform_indices = @transform_0, window_bounds = array<i64: 16, 32>}, {transform_indices = @transform_1, window_bounds = array<i64: 16, 32>}, {transform_indices = @transform_2, window_bounds = array<i64: 16, 8>}, {pipeline_mode = #tpu.pipeline_mode<synchronous>, transform_indices = @transform_3, window_bounds = array<i64: 32, 32>}, {pipeline_mode = #tpu.pipeline_mode<synchronous>, transform_indices = @transform_4, window_bounds = array<i64: 32, 32>}, {pipeline_mode = #tpu.pipeline_mode<synchronous>, transform_indices = @transform_5, window_bounds = array<i64: 8, 32>}, {pipeline_mode = #tpu.pipeline_mode<synchronous>, transform_indices = @transform_6, window_bounds = array<i64: 1, 32>}, {pipeline_mode = #tpu.pipeline_mode<synchronous>, transform_indices = @transform_7, window_bounds = array<i64: 1, 32>}, {pipeline_mode = #tpu.pipeline_mode<synchronous>, transform_indices = @transform_8, window_bounds = array<i64: 1, 1>}, {transform_indices = @transform_9, window_bounds = array<i64: 1, 1, 16>}]} {
    %c0 = arith.constant 0 : index
    %c0_0 = arith.constant 0 : index
    %0 = vector.load %arg1[%c0, %c0_0] : memref<16x32xf32, #tpu.memory_space<vmem>>, vector<16x32xf32>
    %c0_1 = arith.constant 0 : index
    %c0_2 = arith.constant 0 : index
    %1 = vector.load %arg4[%c0_1, %c0_2] : memref<32x32xf32, #tpu.memory_space<vmem>>, vector<32x32xf32>
    %cst = arith.constant dense<0.000000e+00> : vector<16x32xf32>
    %2 = tpu.matmul %0, %1, %cst {dimension_numbers = #tpu.dot_dimension_numbers<[1], [0], [0], [1], [0, 0, 1, 1], [], []>} : vector<16x32xf32>, vector<32x32xf32>, vector<16x32xf32> -> vector<16x32xf32>
    %c0_3 = arith.constant 0 : index
    %c0_4 = arith.constant 0 : index
    %3 = vector.load %arg2[%c0_3, %c0_4] : memref<16x32xf32, #tpu.memory_space<vmem>>, vector<16x32xf32>
    %c0_5 = arith.constant 0 : index
    %c0_6 = arith.constant 0 : index
    %4 = vector.load %arg5[%c0_5, %c0_6] : memref<32x32xf32, #tpu.memory_space<vmem>>, vector<32x32xf32>
    %cst_7 = arith.constant dense<0.000000e+00> : vector<16x32xf32>
    %5 = tpu.matmul %3, %4, %cst_7 {dimension_numbers = #tpu.dot_dimension_numbers<[1], [0], [0], [1], [0, 0, 1, 1], [], []>} : vector<16x32xf32>, vector<32x32xf32>, vector<16x32xf32> -> vector<16x32xf32>
    %6 = arith.addf %2, %5 : vector<16x32xf32>
    %c0_8 = arith.constant 0 : index
    %c0_9 = arith.constant 0 : index
    %7 = vector.load %arg3[%c0_8, %c0_9] : memref<16x8xf32, #tpu.memory_space<vmem>>, vector<16x8xf32>
    %c0_10 = arith.constant 0 : index
    %c0_11 = arith.constant 0 : index
    %8 = vector.load %arg6[%c0_10, %c0_11] : memref<8x32xf32, #tpu.memory_space<vmem>>, vector<8x32xf32>
    %cst_12 = arith.constant dense<0.000000e+00> : vector<16x32xf32>
    %9 = tpu.matmul %7, %8, %cst_12 {dimension_numbers = #tpu.dot_dimension_numbers<[1], [0], [0], [1], [0, 0, 1, 1], [], []>} : vector<16x8xf32>, vector<8x32xf32>, vector<16x32xf32> -> vector<16x32xf32>
    %10 = arith.addf %6, %9 : vector<16x32xf32>
    %c0_13 = arith.constant 0 : index
    %c0_14 = arith.constant 0 : index
    %11 = vector.load %arg7[%c0_13, %c0_14] : memref<1x32xf32, #tpu.memory_space<vmem>>, vector<1x32xf32>
    %12 = vector.broadcast %11 : vector<1x32xf32> to vector<16x32xf32>
    %13 = arith.addf %10, %12 : vector<16x32xf32>
    %cst_15 = arith.constant 0.000000e+00 : f32
    %14 = vector.broadcast %cst_15 : f32 to vector<16x32xf32>
    %15 = arith.maximumf %13, %14 : vector<16x32xf32>
    %c0_16 = arith.constant 0 : index
    %c0_17 = arith.constant 0 : index
    %16 = vector.load %arg8[%c0_16, %c0_17] : memref<1x32xf32, #tpu.memory_space<vmem>>, vector<1x32xf32>
    %cst_18 = arith.constant dense<0.000000e+00> : vector<1x16xf32>
    %17 = tpu.matmul %16, %15, %cst_18 {dimension_numbers = #tpu.dot_dimension_numbers<[1], [1], [0], [0], [0, 0, 1, 0], [], []>} : vector<1x32xf32>, vector<16x32xf32>, vector<1x16xf32> -> vector<1x16xf32>
    %c0_19 = arith.constant 0 : index
    %c0_20 = arith.constant 0 : index
    %18 = vector.load %arg9[%c0_19, %c0_20] : memref<1x1xf32, #tpu.memory_space<vmem>>, vector<1x1xf32>
    %19 = vector.broadcast %18 : vector<1x1xf32> to vector<1x16xf32>
    %20 = arith.addf %17, %19 : vector<1x16xf32>
    %cst_21 = arith.constant 0.000000e+00 : f32
    %21 = vector.broadcast %cst_21 : f32 to vector<1x16xf32>
    %22 = arith.subf %21, %20 : vector<1x16xf32>
    %23 = math.exp %22 : vector<1x16xf32>
    %cst_22 = arith.constant 1.000000e+00 : f32
    %24 = vector.broadcast %cst_22 : f32 to vector<1x16xf32>
    %25 = arith.addf %24, %23 : vector<1x16xf32>
    %cst_23 = arith.constant 1.000000e+00 : f32
    %26 = vector.broadcast %cst_23 : f32 to vector<1x16xf32>
    %27 = arith.divf %26, %25 : vector<1x16xf32>
    %c0_24 = arith.constant 0 : index
    %c0_25 = arith.constant 0 : index
    %c0_26 = arith.constant 0 : index
    %28 = vector.load %arg10[%c0_24, %c0_25, %c0_26] : memref<1x1x16xf32, #tpu.memory_space<vmem>>, vector<1x1x16xf32>
    %29 = vector.shape_cast %28 : vector<1x1x16xf32> to vector<1x16xf32>
    %30 = vector.shape_cast %27 : vector<1x16xf32> to vector<1x1x16xf32>
    tpu.vector_store %arg10[%c0_24, %c0_25, %c0_26], %30 {strides = array<i32>} : memref<1x1x16xf32, #tpu.memory_space<vmem>>, vector<1x1x16xf32>,
    return
  }
  func.func @transform_0(%arg0: i32) -> (i32, i32) {
    %c0_i32 = arith.constant 0 : i32
    %c0_i32_0 = arith.constant 0 : i32
    return %arg0, %c0_i32 : i32, i32
  }
  func.func @transform_1(%arg0: i32) -> (i32, i32) {
    %c0_i32 = arith.constant 0 : i32
    %c0_i32_0 = arith.constant 0 : i32
    return %arg0, %c0_i32 : i32, i32
  }
  func.func @transform_2(%arg0: i32) -> (i32, i32) {
    %c0_i32 = arith.constant 0 : i32
    %c0_i32_0 = arith.constant 0 : i32
    return %arg0, %c0_i32 : i32, i32
  }
  func.func @transform_3(%arg0: i32) -> (i32, i32) {
    %c0_i32 = arith.constant 0 : i32
    %c0_i32_0 = arith.constant 0 : i32
    %c0_i32_1 = arith.constant 0 : i32
    return %c0_i32, %c0_i32_0 : i32, i32
  }
  func.func @transform_4(%arg0: i32) -> (i32, i32) {
    %c0_i32 = arith.constant 0 : i32
    %c0_i32_0 = arith.constant 0 : i32
    %c0_i32_1 = arith.constant 0 : i32
    return %c0_i32, %c0_i32_0 : i32, i32
  }
  func.func @transform_5(%arg0: i32) -> (i32, i32) {
    %c0_i32 = arith.constant 0 : i32
    %c0_i32_0 = arith.constant 0 : i32
    %c0_i32_1 = arith.constant 0 : i32
    return %c0_i32, %c0_i32_0 : i32, i32
  }
  func.func @transform_6(%arg0: i32) -> (i32, i32) {
    %c0_i32 = arith.constant 0 : i32
    %c0_i32_0 = arith.constant 0 : i32
    %c0_i32_1 = arith.constant 0 : i32
    return %c0_i32, %c0_i32_0 : i32, i32
  }
  func.func @transform_7(%arg0: i32) -> (i32, i32) {
    %c0_i32 = arith.constant 0 : i32
    %c0_i32_0 = arith.constant 0 : i32
    %c0_i32_1 = arith.constant 0 : i32
    return %c0_i32, %c0_i32_0 : i32, i32
  }
  func.func @transform_8(%arg0: i32) -> (i32, i32) {
    %c0_i32 = arith.constant 0 : i32
    %c0_i32_0 = arith.constant 0 : i32
    %c0_i32_1 = arith.constant 0 : i32
    return %c0_i32, %c0_i32_0 : i32, i32
  }
  func.func @transform_9(%arg0: i32) -> (i32, i32, i32) {
    %c0_i32 = arith.constant 0 : i32
    %c0_i32_0 = arith.constant 0 : i32
    %c0_i32_1 = arith.constant 0 : i32
    return %arg0, %c0_i32, %c0_i32_0 : i32, i32, i32
  }
}

</mosaic_0001>

<llo_original>
// kernel: tpu_custom_call.1
$region0: #{tpu_custom_call.1}
  #allocation0 [shape = 'u32[]', space=smem, size = 0x4, offset = 0x4, fixed_abs, tag = 'smem constant byte address 0x4 - core index']
  #allocation1 [shape = 'u32[144,128]{1,0:T(1,128)}', space=vmem, size = 0x12000, scoped, tag = 'internal scratch']
  #allocation2 [shape = 'f32[1,1]{1,0:T(1,128)S(1)}', space=vmem, size = 0x200, scoped, tag = 'scoped memory for tpu_custom_call.1']
  %s0 = inlined_call_operand.hbm [shape: f32[8,32], index: 0, kind: input, shape index: {}]
  %s1 = inlined_call_operand.hbm [shape: f32[8,32], index: 1, kind: input, shape index: {}]
  %s2 = inlined_call_operand.vmem [shape: f32[8,8], index: 2, kind: input, shape index: {}]
  %s3 = inlined_call_operand.hbm [shape: f32[32,32], index: 3, kind: input, shape index: {}]
  %s4 = inlined_call_operand.hbm [shape: f32[32,32], index: 4, kind: input, shape index: {}]
  %s5 = inlined_call_operand.vmem [shape: f32[8,32], index: 5, kind: input, shape index: {}]
  %s6 = inlined_call_operand.vmem [shape: f32[1,32], index: 6, kind: input, shape index: {}]
  %s7 = inlined_call_operand.vmem [shape: f32[1,32], index: 7, kind: input, shape index: {}]
  %s8 = inlined_call_operand.<no memory space> [shape: f32[1,1], index: 8, kind: input, shape index: {}]
  %s9 = inlined_call_operand.hbm [shape: f32[1,1,16], index: 9, kind: output, shape index: {}]
  %s10 = sld [smem:[#allocation0]]
  $region62: #{tpu_custom_call.1} parent=0
    _
  %s12 = ssub.s32 1, %s10
  %s13 = scalar_select 0, %s12, %s10
  %v14 = vstv %s8
  %15 = vst [vmem:[#allocation2] sm:$0x1] %v14
  $region1: #{tpu_custom_call.1} parent=0
    #allocation3 [shape = 'u8[8192]{0}', space=vmem, size = 0x2000, scoped, tag = 'input window, operand 0, single buffered']
    #allocation4 [shape = 's32[1]{0}', space=sflag, size = 0x4, scoped, tag = 'scoped memory for tpu_custom_call.1']
    #allocation5 [shape = 's32[1]{0}', space=sflag, size = 0x4, scoped, tag = 'scoped memory for tpu_custom_call.1']
    #allocation6 [shape = 'u8[8192]{0}', space=vmem, size = 0x2000, scoped, tag = 'input window, operand 1, single buffered']
    #allocation7 [shape = 's32[1]{0}', space=sflag, size = 0x4, scoped, tag = 'scoped memory for tpu_custom_call.1']
    #allocation8 [shape = 'u8[16384]{0}', space=vmem, size = 0x4000, scoped, tag = 'input window, operand 3, single buffered']
    #allocation9 [shape = 'u8[16384]{0}', space=vmem, size = 0x4000, scoped, tag = 'input window, operand 4, single buffered']
    #allocation10 [shape = 's32[1]{0}', space=sflag, size = 0x4, scoped, tag = 'scoped memory for tpu_custom_call.1']
    #allocation11 [shape = 'u8[512]{0}', space=vmem, size = 0x400, scoped, tag = 'output window, operand 0, single buffered']
    %16 = vsyncpa [#allocation4], 0
    %17 = vsyncpa [#allocation7], 0
    %18 = vsyncpa [#allocation10], 0
    %19 = vsyncpa [#allocation5], 0
    // Predicated region
    $region2: #{tpu_custom_call.1} parent=1 // pred_check
      _
    $region3: #{tpu_custom_call.1} parent=1 // pred_check_branch
      %21 = sbr.rel (0) target = $region5
    $region4: #{tpu_custom_call.1} parent=1 // pred_region
      %s23 = ssub.s32 256, 128
      %24 = vsyncadd [#allocation4], %s23
      %s25 = sshll.u32 [#allocation3], 4
      %s26 = int_to_ptr.vmem [resolvable:$true] %s25
      %31 = dma.hbm_to_vmem [thread:$0]  %s0, 128, %s26, [#allocation4], 128, 128, 8
    $region5: #{tpu_custom_call.1} parent=1 // pred_fallthru
      _
    // Predicated region
    $region6: #{tpu_custom_call.1} parent=1 // pred_check
      _
    $region7: #{tpu_custom_call.1} parent=1 // pred_check_branch
      %33 = sbr.rel (0) target = $region9
    $region8: #{tpu_custom_call.1} parent=1 // pred_region
      %s35 = ssub.s32 256, 128
      %36 = vsyncadd [#allocation7], %s35
      %s37 = sshll.u32 [#allocation6], 4
      %s38 = int_to_ptr.vmem [resolvable:$true] %s37
      %43 = dma.hbm_to_vmem [thread:$0]  %s1, 128, %s38, [#allocation7], 128, 128, 8
    $region9: #{tpu_custom_call.1} parent=1 // pred_fallthru
      _
    // Predicated region
    $region10: #{tpu_custom_call.1} parent=1 // pred_check
      _
    $region11: #{tpu_custom_call.1} parent=1 // pred_check_branch
      %45 = sbr.rel (0) target = $region13
    $region12: #{tpu_custom_call.1} parent=1 // pred_region
      _
    $region13: #{tpu_custom_call.1} parent=1 // pred_fallthru
      _
    // Predicated region
    $region14: #{tpu_custom_call.1} parent=1 // pred_check
      _
    $region15: #{tpu_custom_call.1} parent=1 // pred_check_branch
      %47 = sbr.rel (0) target = $region17
    $region16: #{tpu_custom_call.1} parent=1 // pred_region
      %s49 = ssub.s32 512, 512
      %50 = vsyncadd [#allocation7], %s49
      %s51 = sshll.u32 [#allocation8], 4
      %s52 = int_to_ptr.vmem [resolvable:$true] %s51
      %57 = dma.hbm_to_vmem [thread:$0]  %s3, 512, %s52, [#allocation7], 128, 128, 8
    $region17: #{tpu_custom_call.1} parent=1 // pred_fallthru
      _
    // Predicated region
    $region18: #{tpu_custom_call.1} parent=1 // pred_check
      _
    $region19: #{tpu_custom_call.1} parent=1 // pred_check_branch
      %59 = sbr.rel (0) target = $region21
    $region20: #{tpu_custom_call.1} parent=1 // pred_region
      %s61 = ssub.s32 512, 512
      %62 = vsyncadd [#allocation10], %s61
      %s63 = sshll.u32 [#allocation9], 4
      %s64 = int_to_ptr.vmem [resolvable:$true] %s63
      %69 = dma.hbm_to_vmem [thread:$0]  %s4, 512, %s64, [#allocation10], 128, 128, 8
    $region21: #{tpu_custom_call.1} parent=1 // pred_fallthru
      _
    // Predicated region
    $region22: #{tpu_custom_call.1} parent=1 // pred_check
      _
    $region23: #{tpu_custom_call.1} parent=1 // pred_check_branch
      %71 = sbr.rel (0) target = $region25
    $region24: #{tpu_custom_call.1} parent=1 // pred_region
      _
    $region25: #{tpu_custom_call.1} parent=1 // pred_fallthru
      _
    // Predicated region
    $region26: #{tpu_custom_call.1} parent=1 // pred_check
      _
    $region27: #{tpu_custom_call.1} parent=1 // pred_check_branch
      %73 = sbr.rel (0) target = $region29
    $region28: #{tpu_custom_call.1} parent=1 // pred_region
      _
    $region29: #{tpu_custom_call.1} parent=1 // pred_fallthru
      _
    // Predicated region
    $region30: #{tpu_custom_call.1} parent=1 // pred_check
      _
    $region31: #{tpu_custom_call.1} parent=1 // pred_check_branch
      %75 = sbr.rel (0) target = $region33
    $region32: #{tpu_custom_call.1} parent=1 // pred_region
      _
    $region33: #{tpu_custom_call.1} parent=1 // pred_fallthru
      _
    // Predicated region
    $region34: #{tpu_custom_call.1} parent=1 // pred_check
      _
    $region35: #{tpu_custom_call.1} parent=1 // pred_check_branch
      %77 = sbr.rel (0) target = $region37
    $region36: #{tpu_custom_call.1} parent=1 // pred_region
      _
    $region37: #{tpu_custom_call.1} parent=1 // pred_fallthru
      _
    // Predicated region
    $region38: #{tpu_custom_call.1} parent=1 // pred_check
      _
    $region39: #{tpu_custom_call.1} parent=1 // pred_check_branch
      %79 = sbr.rel (0) target = $region41
    $region40: #{tpu_custom_call.1} parent=1 // pred_region
      %80 = dma.done [#allocation4], 256
    $region41: #{tpu_custom_call.1} parent=1 // pred_fallthru
      _
    // Predicated region
    $region42: #{tpu_custom_call.1} parent=1 // pred_check
      _
    $region43: #{tpu_custom_call.1} parent=1 // pred_check_branch
      %82 = sbr.rel (0) target = $region45
    $region44: #{tpu_custom_call.1} parent=1 // pred_region
      %83 = dma.done [#allocation7], 256
    $region45: #{tpu_custom_call.1} parent=1 // pred_fallthru
      _
    // Predicated region
    $region46: #{tpu_custom_call.1} parent=1 // pred_check
      _
    $region47: #{tpu_custom_call.1} parent=1 // pred_check_branch
      %85 = sbr.rel (0) target = $region49
    $region48: #{tpu_custom_call.1} parent=1 // pred_region
      %86 = dma.done [#allocation7], 512
    $region49: #{tpu_custom_call.1} parent=1 // pred_fallthru
      _
    // Predicated region
    $region50: #{tpu_custom_call.1} parent=1 // pred_check
      _
    $region51: #{tpu_custom_call.1} parent=1 // pred_check_branch
      %88 = sbr.rel (0) target = $region53
    $region52: #{tpu_custom_call.1} parent=1 // pred_region
      %89 = dma.done [#allocation10], 512
    $region53: #{tpu_custom_call.1} parent=1 // pred_fallthru
      _
    %v90 = vld [vmem:[#allocation3] sm:$0xff]
    %v91 = vld [vmem:[#allocation3 + $0x8] sm:$0xff]
    %v92 = vld [vmem:[#allocation8] sm:$0xff]
    %v93 = vld [vmem:[#allocation8 + $0x8] sm:$0xff]
    %v94 = vld [vmem:[#allocation8 + $0x10] sm:$0xff]
    %v95 = vld [vmem:[#allocation8 + $0x18] sm:$0xff]
    %v96 = vld [vmem:[#allocation6] sm:$0xff]
    %v97 = vld [vmem:[#allocation6 + $0x8] sm:$0xff]
    %v98 = vld [vmem:[#allocation9] sm:$0xff]
    %v99 = vld [vmem:[#allocation9 + $0x8] sm:$0xff]
    %v100 = vld [vmem:[#allocation9 + $0x10] sm:$0xff]
    %v101 = vld [vmem:[#allocation9 + $0x18] sm:$0xff]
    %vm102 = vcmask 261120
    %v104 = vsel %vm102, %v96, 0
    %v107 = vsel %vm102, %v97, 0
    %109 = vmatprep.subr.mxu0 0.0
    %110 = vmatpush1.msra.mxu0 %v98
    %111 = vmatprep.subr.mxu0 0.0
    %112 = vmatpush1.msra.mxu0 %v99
    %113 = vmatprep.subr.mxu0 0.0
    %114 = vmatpush1.msra.mxu0 %v100
    %115 = vmatprep.subr.mxu0 0.0
    %116 = vmatpush1.msra.mxu0 %v101
    %117 = vmatprep.subr.mxu0 0.0
    %118 = vmatpush1.msra.mxu0 0.0
    %119 = vmatprep.subr.mxu0 0.0
    %120 = vmatpush1.msra.mxu0 0.0
    %121 = vmatprep.subr.mxu0 0.0
    %122 = vmatpush1.msra.mxu0 0.0
    %123 = vmatprep.subr.mxu0 0.0
    %124 = vmatpush1.msra.mxu0 0.0
    %125 = vmatprep.subr.mxu0 0.0
    %126 = vmatpush1.msra.mxu0 0.0
    %127 = vmatprep.subr.mxu0 0.0
    %128 = vmatpush1.msra.mxu0 0.0
    %129 = vmatprep.subr.mxu0 0.0
    %130 = vmatpush1.msra.mxu0 0.0
    %131 = vmatprep.subr.mxu0 0.0
    %132 = vmatpush1.msra.mxu0 0.0
    %133 = vmatprep.subr.mxu0 0.0
    %134 = vmatpush1.msra.mxu0 0.0
    %135 = vmatprep.subr.mxu0 0.0
    %136 = vmatpush1.msra.mxu0 0.0
    %137 = vmatprep.subr.mxu0 0.0
    %138 = vmatpush1.msra.mxu0 0.0
    %139 = vmatprep.subr.mxu0 0.0
    %140 = vmatpush1.msra.mxu0 0.0
    %141 = vmatprep.subr.mxu0 0.0
    %142 = vmatpush1.msra.mxu0 0.0
    %143 = vmatprep.subr.mxu0 0.0
    %144 = vmatpush1.msra.mxu0 0.0
    %145 = vmatprep.subr.mxu0 0.0
    %146 = vmatpush1.msra.mxu0 0.0
    %147 = vmatprep.subr.mxu0 0.0
    %148 = vmatpush1.msra.mxu0 0.0
    %149 = vmatprep.subr.mxu0 0.0
    %150 = vmatpush1.msra.mxu0 0.0
    %151 = vmatprep.subr.mxu0 0.0
    %152 = vmatpush1.msra.mxu0 0.0
    %153 = vmatprep.subr.mxu0 0.0
    %154 = vmatpush1.msra.mxu0 0.0
    %155 = vmatprep.subr.mxu0 0.0
    %156 = vmatpush1.msra.mxu0 0.0
    %157 = vmatprep.subr.mxu0 0.0
    %158 = vmatpush1.msra.mxu0 0.0
    %159 = vmatprep.subr.mxu0 0.0
    %160 = vmatpush1.msra.mxu0 0.0
    %161 = vmatprep.subr.mxu0 0.0
    %162 = vmatpush1.msra.mxu0 0.0
    %163 = vmatprep.subr.mxu0 0.0
    %164 = vmatpush1.msra.mxu0 0.0
    %165 = vmatprep.subr.mxu0 0.0
    %166 = vmatpush1.msra.mxu0 0.0
    %167 = vmatprep.subr.mxu0 0.0
    %168 = vmatpush1.msra.mxu0 0.0
    %169 = vmatprep.subr.mxu0 0.0
    %170 = vmatpush1.msra.mxu0 0.0
    %171 = vmatprep.subr.mxu0 0.0
    %172 = vmatpush1.msra.mxu0 0.0
    %173 = vmatprep.mubr.f32.mxu0 0.0
    %174 = vmatmul.mubr.f32.gmra.mrb[0].mxu0 %v104
    %v175 = vpop.f32.mrb[0].mxu0
    %v176 = vadd.f32 0.0, %v175
    %v177 = vpop.f32.mrb[0].mxu0
    %178 = vmatprep.mubr.f32.mxu0 0.0
    %179 = vmatmul.mubr.f32.gmra.mrb[0].mxu0 %v107
    %v180 = vpop.f32.mrb[0].mxu0
    %v181 = vadd.f32 0.0, %v180
    %v182 = vpop.f32.mrb[0].mxu0
    %183 = vdwg.mxu0
    %v185 = vsel %vm102, %v90, 0
    %v188 = vsel %vm102, %v91, 0
    %190 = vmatprep.subr.mxu0 0.0
    %191 = vmatpush1.msra.mxu0 %v92
    %192 = vmatprep.subr.mxu0 0.0
    %193 = vmatpush1.msra.mxu0 %v93
    %194 = vmatprep.subr.mxu0 0.0
    %195 = vmatpush1.msra.mxu0 %v94
    %196 = vmatprep.subr.mxu0 0.0
    %197 = vmatpush1.msra.mxu0 %v95
    %198 = vmatprep.subr.mxu0 0.0
    %199 = vmatpush1.msra.mxu0 0.0
    %200 = vmatprep.subr.mxu0 0.0
    %201 = vmatpush1.msra.mxu0 0.0
    %202 = vmatprep.subr.mxu0 0.0
    %203 = vmatpush1.msra.mxu0 0.0
    %204 = vmatprep.subr.mxu0 0.0
    %205 = vmatpush1.msra.mxu0 0.0
    %206 = vmatprep.subr.mxu0 0.0
    %207 = vmatpush1.msra.mxu0 0.0
    %208 = vmatprep.subr.mxu0 0.0
    %209 = vmatpush1.msra.mxu0 0.0
    %210 = vmatprep.subr.mxu0 0.0
    %211 = vmatpush1.msra.mxu0 0.0
    %212 = vmatprep.subr.mxu0 0.0
    %213 = vmatpush1.msra.mxu0 0.0
    %214 = vmatprep.subr.mxu0 0.0
    %215 = vmatpush1.msra.mxu0 0.0
    %216 = vmatprep.subr.mxu0 0.0
    %217 = vmatpush1.msra.mxu0 0.0
    %218 = vmatprep.subr.mxu0 0.0
    %219 = vmatpush1.msra.mxu0 0.0
    %220 = vmatprep.subr.mxu0 0.0
    %221 = vmatpush1.msra.mxu0 0.0
    %222 = vmatprep.subr.mxu0 0.0
    %223 = vmatpush1.msra.mxu0 0.0
    %224 = vmatprep.subr.mxu0 0.0
    %225 = vmatpush1.msra.mxu0 0.0
    %226 = vmatprep.subr.mxu0 0.0
    %227 = vmatpush1.msra.mxu0 0.0
    %228 = vmatprep.subr.mxu0 0.0
    %229 = vmatpush1.msra.mxu0 0.0
    %230 = vmatprep.subr.mxu0 0.0
    %231 = vmatpush1.msra.mxu0 0.0
    %232 = vmatprep.subr.mxu0 0.0
    %233 = vmatpush1.msra.mxu0 0.0
    %234 = vmatprep.subr.mxu0 0.0
    %235 = vmatpush1.msra.mxu0 0.0
    %236 = vmatprep.subr.mxu0 0.0
    %237 = vmatpush1.msra.mxu0 0.0
    %238 = vmatprep.subr.mxu0 0.0
    %239 = vmatpush1.msra.mxu0 0.0
    %240 = vmatprep.subr.mxu0 0.0
    %241 = vmatpush1.msra.mxu0 0.0
    %242 = vmatprep.subr.mxu0 0.0
    %243 = vmatpush1.msra.mxu0 0.0
    %244 = vmatprep.subr.mxu0 0.0
    %245 = vmatpush1.msra.mxu0 0.0
    %246 = vmatprep.subr.mxu0 0.0
    %247 = vmatpush1.msra.mxu0 0.0
    %248 = vmatprep.subr.mxu0 0.0
    %249 = vmatpush1.msra.mxu0 0.0
    %250 = vmatprep.subr.mxu0 0.0
    %251 = vmatpush1.msra.mxu0 0.0
    %252 = vmatprep.subr.mxu0 0.0
    %253 = vmatpush1.msra.mxu0 0.0
    %254 = vmatprep.mubr.f32.mxu0 0.0
    %255 = vmatmul.mubr.f32.gmra.mrb[0].mxu0 %v185
    %v256 = vpop.f32.mrb[0].mxu0
    %v257 = vadd.f32 %v176, %v256
    %v258 = vpop.f32.mrb[0].mxu0
    %259 = vmatprep.mubr.f32.mxu0 0.0
    %260 = vmatmul.mubr.f32.gmra.mrb[0].mxu0 %v188
    %v261 = vpop.f32.mrb[0].mxu0
    %v262 = vadd.f32 %v181, %v261
    %v263 = vpop.f32.mrb[0].mxu0
    %264 = vdwg.mxu0
    %v265 = vld [vmem:[%s2] sm:$0xff]
    %v266 = vld [vmem:[%s2 + $0x8] sm:$0xff]
    %v267 = vld [vmem:[%s5] sm:$0xff]
    %vm268 = vcmask 64512
    %v270 = vsel %vm268, %v265, 0
    %v273 = vsel %vm268, %v266, 0
    %275 = vmatprep.subr.mxu0 0.0
    %276 = vmatpush1.msra.mxu0 %v267
    %277 = vmatprep.subr.mxu0 0.0
    %278 = vmatpush1.msra.mxu0 0.0
    %279 = vmatprep.subr.mxu0 0.0
    %280 = vmatpush1.msra.mxu0 0.0
    %281 = vmatprep.subr.mxu0 0.0
    %282 = vmatpush1.msra.mxu0 0.0
    %283 = vmatprep.subr.mxu0 0.0
    %284 = vmatpush1.msra.mxu0 0.0
    %285 = vmatprep.subr.mxu0 0.0
    %286 = vmatpush1.msra.mxu0 0.0
    %287 = vmatprep.subr.mxu0 0.0
    %288 = vmatpush1.msra.mxu0 0.0
    %289 = vmatprep.subr.mxu0 0.0
    %290 = vmatpush1.msra.mxu0 0.0
    %291 = vmatprep.subr.mxu0 0.0
    %292 = vmatpush1.msra.mxu0 0.0
    %293 = vmatprep.subr.mxu0 0.0
    %294 = vmatpush1.msra.mxu0 0.0
    %295 = vmatprep.subr.mxu0 0.0
    %296 = vmatpush1.msra.mxu0 0.0
    %297 = vmatprep.subr.mxu0 0.0
    %298 = vmatpush1.msra.mxu0 0.0
    %299 = vmatprep.subr.mxu0 0.0
    %300 = vmatpush1.msra.mxu0 0.0
    %301 = vmatprep.subr.mxu0 0.0
    %302 = vmatpush1.msra.mxu0 0.0
    %303 = vmatprep.subr.mxu0 0.0
    %304 = vmatpush1.msra.mxu0 0.0
    %305 = vmatprep.subr.mxu0 0.0
    %306 = vmatpush1.msra.mxu0 0.0
    %307 = vmatprep.subr.mxu0 0.0
    %308 = vmatpush1.msra.mxu0 0.0
    %309 = vmatprep.subr.mxu0 0.0
    %310 = vmatpush1.msra.mxu0 0.0
    %311 = vmatprep.subr.mxu0 0.0
    %312 = vmatpush1.msra.mxu0 0.0
    %313 = vmatprep.subr.mxu0 0.0
    %314 = vmatpush1.msra.mxu0 0.0
    %315 = vmatprep.subr.mxu0 0.0
    %316 = vmatpush1.msra.mxu0 0.0
    %317 = vmatprep.subr.mxu0 0.0
    %318 = vmatpush1.msra.mxu0 0.0
    %319 = vmatprep.subr.mxu0 0.0
    %320 = vmatpush1.msra.mxu0 0.0
    %321 = vmatprep.subr.mxu0 0.0
    %322 = vmatpush1.msra.mxu0 0.0
    %323 = vmatprep.subr.mxu0 0.0
    %324 = vmatpush1.msra.mxu0 0.0
    %325 = vmatprep.subr.mxu0 0.0
    %326 = vmatpush1.msra.mxu0 0.0
    %327 = vmatprep.subr.mxu0 0.0
    %328 = vmatpush1.msra.mxu0 0.0
    %329 = vmatprep.subr.mxu0 0.0
    %330 = vmatpush1.msra.mxu0 0.0
    %331 = vmatprep.subr.mxu0 0.0
    %332 = vmatpush1.msra.mxu0 0.0
    %333 = vmatprep.subr.mxu0 0.0
    %334 = vmatpush1.msra.mxu0 0.0
    %335 = vmatprep.subr.mxu0 0.0
    %336 = vmatpush1.msra.mxu0 0.0
    %337 = vmatprep.subr.mxu0 0.0
    %338 = vmatpush1.msra.mxu0 0.0
    %339 = vmatprep.mubr.f32.mxu0 0.0
    %340 = vmatmul.mubr.f32.gmra.mrb[0].mxu0 %v270
    %v341 = vpop.f32.mrb[0].mxu0
    %v342 = vadd.f32 0.0, %v341
    %v343 = vpop.f32.mrb[0].mxu0
    %344 = vmatprep.mubr.f32.mxu0 0.0
    %345 = vmatmul.mubr.f32.gmra.mrb[0].mxu0 %v273
    %v346 = vpop.f32.mrb[0].mxu0
    %v347 = vadd.f32 0.0, %v346
    %v348 = vpop.f32.mrb[0].mxu0
    %349 = vdwg.mxu0
    %v350 = vadd.f32 %v257, %v342
    %v351 = vadd.f32 %v262, %v347
    %v352 = vld [vmem:[%s6] sm:$0x1]
    %v354 = vlaneseq
    %v355 = vshrl.u32 %v354, 7
    %v356 = vsub.s32 0, %v355
    %v357 = vrot.slane %v352, %v356
    %v359 = vadd.f32 %v350, %v357
    %v360 = vadd.f32 %v351, %v357
    %v361 = vmax.f32 %v359, 0.0
    %v362 = vmax.f32 %v360, 0.0
    %v363 = vld [vmem:[%s7] sm:$0x1]
    %v364 = vld [vmem:[#allocation2] sm:$0x1]
    %366 = vset.pattern.permute.xlu0 0
    %367 = vperm.xlu0 %366, %v364
    %v368 = vpop.permute.xlu0 %367
    %v370 = vlaneseq
    %v371 = vshrl.u32 %v370, 7
    %v372 = vsub.s32 0, %v371
    %v373 = vrot.slane %v368, %v372
    %v375 = vsel %vm102, %v363, 0
    %v378 = vsel %vm102, %v361, 0
    %v381 = vsel %vm102, %v362, 0
    %383 = vmatprep.subr.mxu0 0.0
    %384 = vmatpush1.xpose.msra.mxu0 %v378
    %385 = vmatprep.subr.mxu0 0.0
    %386 = vmatpush1.xpose.msra.mxu0 %v381
    %387 = vmatprep.subr.mxu0 0.0
    %388 = vmatpush1.xpose.msra.mxu0 0.0
    %389 = vmatprep.subr.mxu0 0.0
    %390 = vmatpush1.xpose.msra.mxu0 0.0
    %391 = vmatprep.subr.mxu0 0.0
    %392 = vmatpush1.xpose.msra.mxu0 0.0
    %393 = vmatprep.subr.mxu0 0.0
    %394 = vmatpush1.xpose.msra.mxu0 0.0
    %395 = vmatprep.subr.mxu0 0.0
    %396 = vmatpush1.xpose.msra.mxu0 0.0
    %397 = vmatprep.subr.mxu0 0.0
    %398 = vmatpush1.xpose.msra.mxu0 0.0
    %399 = vmatprep.subr.mxu0 0.0
    %400 = vmatpush1.xpose.msra.mxu0 0.0
    %401 = vmatprep.subr.mxu0 0.0
    %402 = vmatpush1.xpose.msra.mxu0 0.0
    %403 = vmatprep.subr.mxu0 0.0
    %404 = vmatpush1.xpose.msra.mxu0 0.0
    %405 = vmatprep.subr.mxu0 0.0
    %406 = vmatpush1.xpose.msra.mxu0 0.0
    %407 = vmatprep.subr.mxu0 0.0
    %408 = vmatpush1.xpose.msra.mxu0 0.0
    %409 = vmatprep.subr.mxu0 0.0
    %410 = vmatpush1.xpose.msra.mxu0 0.0
    %411 = vmatprep.subr.mxu0 0.0
    %412 = vmatpush1.xpose.msra.mxu0 0.0
    %413 = vmatprep.subr.mxu0 0.0
    %414 = vmatpush1.xpose.msra.mxu0 0.0
    %415 = vmatprep.subr.mxu0 0.0
    %416 = vmatpush1.xpose.msra.mxu0 0.0
    %417 = vmatprep.subr.mxu0 0.0
    %418 = vmatpush1.xpose.msra.mxu0 0.0
    %419 = vmatprep.subr.mxu0 0.0
    %420 = vmatpush1.xpose.msra.mxu0 0.0
    %421 = vmatprep.subr.mxu0 0.0
    %422 = vmatpush1.xpose.msra.mxu0 0.0
    %423 = vmatprep.subr.mxu0 0.0
    %424 = vmatpush1.xpose.msra.mxu0 0.0
    %425 = vmatprep.subr.mxu0 0.0
    %426 = vmatpush1.xpose.msra.mxu0 0.0
    %427 = vmatprep.subr.mxu0 0.0
    %428 = vmatpush1.xpose.msra.mxu0 0.0
    %429 = vmatprep.subr.mxu0 0.0
    %430 = vmatpush1.xpose.msra.mxu0 0.0
    %431 = vmatprep.subr.mxu0 0.0
    %432 = vmatpush1.xpose.msra.mxu0 0.0
    %433 = vmatprep.subr.mxu0 0.0
    %434 = vmatpush1.xpose.msra.mxu0 0.0
    %435 = vmatprep.subr.mxu0 0.0
    %436 = vmatpush1.xpose.msra.mxu0 0.0
    %437 = vmatprep.subr.mxu0 0.0
    %438 = vmatpush1.xpose.msra.mxu0 0.0
    %439 = vmatprep.subr.mxu0 0.0
    %440 = vmatpush1.xpose.msra.mxu0 0.0
    %441 = vmatprep.subr.mxu0 0.0
    %442 = vmatpush1.xpose.msra.mxu0 0.0
    %443 = vmatprep.subr.mxu0 0.0
    %444 = vmatpush1.xpose.msra.mxu0 0.0
    %445 = vmatprep.subr.mxu0 0.0
    %446 = vmatpush1.xpose.msra.mxu0 0.0
    %447 = vmatprep.mubr.f32.mxu0 0.0
    %448 = vmatmul.mubr.f32.gmra.mrb[0].mxu0 %v375
    %v449 = vpop.f32.mrb[0].mxu0
    %v450 = vadd.f32 %v373, %v449
    %v451 = vpop.f32.mrb[0].mxu0
    %452 = vdwg.mxu0
    %v453 = vsub.f32 0.0, %v450
    %v454 = vmul.f32 %v453, 1.442695
    %v455 = vpow.pop %v454
    %v456 = vadd.f32 %v455, 1.0
    %v457 = vrcp.pop %v456
    %v458 = vmul.f32 1.0, %v457
    %vm459 = vcmask 122880
    %460 = vst.msk [vmem:[#allocation11] sm:$0x1] %vm459, %v458
    // Predicated region
    $region54: #{tpu_custom_call.1} parent=1 // pred_check
      _
    $region55: #{tpu_custom_call.1} parent=1 // pred_check_branch
      %462 = sbr.rel (0) target = $region57
    $region56: #{tpu_custom_call.1} parent=1 // pred_region
      %s464 = ssub.s32 16, 16
      %465 = vsyncadd [#allocation5], %s464
      %s467 = sshll.u32 [#allocation11], 4
      %s468 = int_to_ptr.vmem [resolvable:$true] %s467
      %470 = dma.vmem_to_hbm [thread:$0]  %s468, 16, %s9, [#allocation5]
    $region57: #{tpu_custom_call.1} parent=1 // pred_fallthru
      _
    // Predicated region
    $region58: #{tpu_custom_call.1} parent=1 // pred_check
      _
    $region59: #{tpu_custom_call.1} parent=1 // pred_check_branch
      %472 = sbr.rel (0) target = $region61
    $region60: #{tpu_custom_call.1} parent=1 // pred_region
      %473 = dma.done [#allocation5], 16
    $region61: #{tpu_custom_call.1} parent=1 // pred_fallthru
      _
    %474 = vsyncpa [#allocation4], 1
    %475 = vsyncpa [#allocation7], 1
    %476 = vsyncpa [#allocation10], 1
    %477 = vsyncpa [#allocation5], 1

</llo_original>
